<compile_context>
chip_gen: v7x
topology: tpu7x:2x2x1
jax: 0.10.0
libtpu: 0.0.40
codegen_flags: <defaults>
</compile_context>

<pallas_src>
import functools

import numpy as np
import jax
import jax.numpy as jnp
from jax.experimental import pallas as pl
from jax.experimental.pallas import tpu as pltpu

_LANE = 128
_SUBLANE_BF16 = 16   # bf16 packs 16 sublanes per vreg


def _cdiv(a, b):
    return -(-a // b)


def _round_up(x, m):
    return _cdiv(x, m) * m


@functools.lru_cache(maxsize=None)
def _dft_factors(n_in, dim1, modes1):
    """Static DFT/IDFT factor matrices (norm='forward' on both transforms, matching the
    PyTorch module), built once per (N, dim1, modes1) in numpy."""
    n = np.arange(n_in, dtype=np.float64)[:, None]
    m = np.arange(modes1, dtype=np.float64)[None, :]
    ang_f = 2.0 * np.pi * n * m / n_in
    a = np.cos(ang_f) / n_in          # (N, M): Re part of rfft(norm='forward'), truncated
    b = -np.sin(ang_f) / n_in         # (N, M): Im part

    t = np.arange(dim1, dtype=np.float64)[None, :]
    mm = np.arange(modes1)
    ang_i = 2.0 * np.pi * mm[:, None].astype(np.float64) * t / dim1
    is_dc_or_nyq = (mm == 0) | ((dim1 % 2 == 0) & (mm == dim1 // 2))
    c = np.where(is_dc_or_nyq, 1.0, 2.0)[:, None]     # Hermitian doubling factor
    ci = c * np.cos(ang_i)            # (M, dim1): coefficient of Yr in irfft(norm='forward')
    si = -c * np.sin(ang_i)           # (M, dim1): coefficient of Yi
    si[is_dc_or_nyq, :] = 0.0         # irfft ignores Im at DC / Nyquist
    return (a.astype(np.float32), b.astype(np.float32),
            ci.astype(np.float32), si.astype(np.float32))


def _vmem_capacity_bytes():
    """Per-core VMEM capacity (generation-aware); conservative 64 MiB fallback."""
    try:
        return int(pltpu.get_tpu_info().vmem_capacity_bytes)
    except Exception:
        return 64 * 1024 * 1024


def _pick_batch_tile(batch, bytes_per_row, budget_bytes):
    """MXU-row-friendly batch tile.

    Batch is zero-padded up to a multiple of the returned tile, so no divisor requirement
    on `batch`.  Prefers large 256/128-row tiles (MXU M dimension), an even (>= 2) grid-step
    count (v7x megacore sharding), and the per-tile VMEM budget.  Floor is 16 rows (bf16
    sublane packing); if even that exceeds the budget, the caller's vmem_limit grows instead.
    """
    max_rows = max(budget_bytes // max(bytes_per_row, 1), _SUBLANE_BF16)
    cap = _round_up(batch, _SUBLANE_BF16)
    cands = [t for t in (512, 256, 128, 64, 32, 16) if t <= max_rows and t <= cap]
    if not cands:
        return _SUBLANE_BF16
    for t in cands:  # largest tile with an even (>= 2) step count, if any
        steps = _cdiv(batch, t)
        if steps >= 2 and steps % 2 == 0:
            return t
    return cands[0]


def _spectral_matmul_kernel(x_ref, t_ref, o_ref):
    # One lane-dense MXU matmul per batch tile: bf16 (TB, K) @ bf16 (K, PCO) -> f32 (TB, PCO).
    o_ref[...] = jnp.dot(x_ref[...], t_ref[...],
                         preferred_element_type=jnp.float32).astype(o_ref.dtype)


def _spectral_matmul_acc_kernel(x_ref, t_ref, o_ref, acc_ref):
    # K-reduction variant: only a (TK, PCO) slab of T is resident per step; f32 accumulator.
    k = pl.program_id(1)

    @pl.when(k == 0)
    def _():
        acc_ref[...] = jnp.zeros_like(acc_ref)

    acc_ref[...] += jnp.dot(x_ref[...], t_ref[...], preferred_element_type=jnp.float32)

    @pl.when(k == pl.num_programs(1) - 1)
    def _():
        o_ref[...] = acc_ref[...].astype(o_ref.dtype)


@functools.partial(jax.jit, static_argnums=(3, 4, 5))
def _spectral_conv1d_impl(x, w_real, w_imag, dim1, modes1, k_tile):
    B, Cin, N = x.shape
    Cin_w, Cout, M = w_real.shape
    assert Cin_w == Cin and M == modes1
    assert modes1 <= N // 2 + 1, "modes1 must be <= N//2 + 1 (rfft truncation)"
    assert modes1 <= dim1 // 2 + 1, "modes1 must be <= dim1//2 + 1 (irfft spectrum)"

    a, b_, ci, si = (jnp.asarray(v) for v in _dft_factors(N, dim1, modes1))

    # Fold forward DFT, complex channel mix and inverse DFT into one real operator
    # T[(i, n), (o, t)].  Two einsums instead of four: pre-fold the (traced) weights with the
    # small IDFT factor matrices, then contract once each with the forward cos/sin factors.
    p = w_real[:, :, :, None] * ci[None, None] + w_imag[:, :, :, None] * si[None, None]
    q = w_real[:, :, :, None] * si[None, None] - w_imag[:, :, :, None] * ci[None, None]
    t_op = jnp.einsum("nm,iomt->inot", a, p) + jnp.einsum("nm,iomt->inot", b_, q)

    K = Cin * N
    CO = Cout * dim1
    PCO = _round_up(CO, _LANE)        # lane-dense output columns (unmasked stores)
    KP0 = _round_up(K, _LANE)         # lane-dense LHS contraction columns

    # ---- generation-aware VMEM budget & tiling -------------------------------------------
    vmem_cap = _vmem_capacity_bytes()
    usable = (3 * vmem_cap) // 4

    t_bytes_full = KP0 * PCO * 2      # bf16 T, single-buffered (grid-invariant)
    if k_tile is not None:
        tk = min(_round_up(int(k_tile), _LANE), KP0)
    elif t_bytes_full <= (3 * usable) // 5:
        tk = KP0                      # whole contraction dim resident -> single-matmul path
    else:
        # K-reduction path: largest 128-multiple slab whose double-buffered bf16 copy
        # takes at most ~40% of the budget.
        tk = max(_LANE, (((2 * usable) // 5) // (2 * PCO * 2)) // _LANE * _LANE)
        tk = min(tk, KP0)
    KP = _round_up(KP0, tk)           # == KP0 when tk == KP0
    split_k = tk < KP

    if split_k:
        t_res = 2 * tk * PCO * 2                          # double-buffered bf16 T slab
        row_bytes = 2 * tk * 2 + 2 * PCO * 4 + PCO * 4    # x (dbuf) + out (dbuf) + f32 acc
    else:
        t_res = t_bytes_full                              # single-buffered (pl.Buffered(1))
        row_bytes = 2 * KP * 2 + 2 * PCO * 4              # x tile (dbuf) + out tile (dbuf)
    TB = _pick_batch_tile(B, row_bytes, max(usable - t_res, 0))
    BP = _round_up(B, TB)

    vmem_needed = t_res + TB * row_bytes                  # already includes double-buffering
    vmem_limit = int(min(vmem_cap, max(int(1.25 * vmem_needed), 16 * 1024 * 1024)))

    # ---- operands: bf16 inputs (native MXU dtype), f32 accumulation / f32 output ---------
    # TODO(synk): a bf16 output dtype would halve the dominant writeback stream on v5e.
    t_mat = jnp.pad(t_op.reshape(K, CO), ((0, KP - K), (0, PCO - CO))).astype(jnp.bfloat16)
    x2d = jnp.pad(x.reshape(B, K), ((0, BP - B), (0, KP - K))).astype(jnp.bfloat16)

    if split_k:
        out2d = pl.pallas_call(
            _spectral_matmul_acc_kernel,
            out_shape=jax.ShapeDtypeStruct((BP, PCO), jnp.float32),
            grid=(BP // TB, KP // tk),
            in_specs=[
                pl.BlockSpec((TB, tk), lambda b, k: (b, k)),
                pl.BlockSpec((tk, PCO), lambda b, k: (k, 0)),
            ],
            out_specs=pl.BlockSpec((TB, PCO), lambda b, k: (b, 0)),
            scratch_shapes=[pltpu.VMEM((TB, PCO), jnp.float32)],
            compiler_params=pltpu.CompilerParams(
                dimension_semantics=("parallel", "arbitrary"),
                vmem_limit_bytes=vmem_limit,
            ),
        )(x2d, t_mat)
    else:
        out2d = pl.pallas_call(
            _spectral_matmul_kernel,
            out_shape=jax.ShapeDtypeStruct((BP, PCO), jnp.float32),
            grid=(BP // TB,),
            in_specs=[
                pl.BlockSpec((TB, KP), lambda g: (g, 0)),
                # T is grid-invariant: keep one resident copy instead of double-buffering it.
                pl.BlockSpec((KP, PCO), lambda g: (0, 0), pipeline_mode=pl.Buffered(1)),
            ],
            out_specs=pl.BlockSpec((TB, PCO), lambda g: (g, 0)),
            compiler_params=pltpu.CompilerParams(
                dimension_semantics=("parallel",),
                vmem_limit_bytes=vmem_limit,
            ),
        )(x2d, t_mat)

    # TODO(synk): for layers where even one (TB, PCO) row-slab exceeds VMEM, add an
    # output-column grid axis (tile PCO) on top of the K-reduction path.
    return out2d[:B, :CO].reshape(B, Cout, dim1)


def spectral_conv1d(x, w_real, w_imag, dim1, modes1, k_tile=None):
    """x: (B, Cin, N) f32; w_real/w_imag: (Cin, Cout, modes1) f32 -> (B, Cout, dim1) f32.
    k_tile (optional, multiple of 128) forces the K-reduction accumulator path."""
    return _spectral_conv1d_impl(x, w_real, w_imag, dim1, modes1, k_tile)


def spectral_conv1d_reference(x, w_real, w_imag, dim1, modes1):
    """Pure-JAX reference mirroring the PyTorch forward (norm='forward' on both FFTs)."""
    B, Cin, N = x.shape
    Cout = w_real.shape[1]
    x_ft = jnp.fft.rfft(x, norm="forward")                                   # (B, Cin, N//2+1)
    w = w_real.astype(jnp.complex64) + 1j * w_imag.astype(jnp.complex64)     # (Cin, Cout, M)
    mixed = jnp.einsum("bix,iox->box", x_ft[:, :, :modes1], w)               # (B, Cout, M)
    out_ft = jnp.zeros((B, Cout, dim1 // 2 + 1), dtype=jnp.complex64)
    out_ft = out_ft.at[:, :, :modes1].set(mixed)
    return jnp.fft.irfft(out_ft, n=dim1, norm="forward").astype(jnp.float32)


def _make_inputs(key, batch, cin, cout, n, modes1):
    k_x, k_wr, k_wi = jax.random.split(key, 3)
    x = jax.random.normal(k_x, (batch, cin, n), dtype=jnp.float32)
    scale = 1.0 / (cin * cout)
    w_real = scale * jax.random.uniform(k_wr, (cin, cout, modes1), dtype=jnp.float32)
    w_imag = scale * jax.random.uniform(k_wi, (cin, cout, modes1), dtype=jnp.float32)
    return x, w_real, w_imag


if __name__ == "__main__":
    key = jax.random.PRNGKey(0)
    k1, k2 = jax.random.split(key)

    # Test 1: small shapes consistent with the module (single-matmul path, resident T).
    B, Cin, Cout, N, dim1, modes1 = 2, 4, 4, 16, 16, 5
    x, w_real, w_imag = _make_inputs(k1, B, Cin, Cout, N, modes1)
    y = jax.block_until_ready(spectral_conv1d(x, w_real, w_imag, dim1, modes1))
    y_ref = spectral_conv1d_reference(x, w_real, w_imag, dim1, modes1)
    # bf16 operands with f32 accumulation -> looser tolerance than the f32 version.
    np.testing.assert_allclose(np.asarray(y), np.asarray(y_ref), rtol=2e-2, atol=5e-3)

    # Test 2: force the K-reduction accumulator path (k_tile=128 on K=256) to exercise it.
    B2, Cin2, Cout2, N2, dim1_2, modes1_2 = 4, 4, 4, 64, 64, 16
    x2, w_real2, w_imag2 = _make_inputs(k2, B2, Cin2, Cout2, N2, modes1_2)
    y2 = jax.block_until_ready(
        spectral_conv1d(x2, w_real2, w_imag2, dim1_2, modes1_2, k_tile=128))
    y2_ref = spectral_conv1d_reference(x2, w_real2, w_imag2, dim1_2, modes1_2)
    np.testing.assert_allclose(np.asarray(y2), np.asarray(y2_ref), rtol=2e-2, atol=5e-3)

    print("KERNEL_OK")
</pallas_src>

<mosaic_0001>
module attributes {stable_mosaic.version = 11 : i64} {
  func.func @_spectral_matmul_kernel(%arg0: i32, %arg1: memref<16x128xbf16, #tpu.memory_space<vmem>>, %arg2: memref<128x128xbf16, #tpu.memory_space<vmem>>, %arg3: memref<16x128xf32, #tpu.memory_space<vmem>>) attributes {dimension_semantics = [#tpu.dimension_semantics<parallel>], iteration_bounds = array<i64: 1>, scalar_prefetch = 0 : i64, scratch_operands = 0 : i64, tpu.core_type = #tpu.core_type<tc>, window_params = [{transform_indices = @transform_0, window_bounds = array<i64: 16, 128>}, {pipeline_mode = #tpu.pipeline_mode<synchronous>, transform_indices = @transform_1, window_bounds = array<i64: 128, 128>}, {transform_indices = @transform_2, window_bounds = array<i64: 16, 128>}]} {
    %c0 = arith.constant 0 : index
    %c0_0 = arith.constant 0 : index
    %0 = vector.load %arg1[%c0, %c0_0] : memref<16x128xbf16, #tpu.memory_space<vmem>>, vector<16x128xbf16>
    %c0_1 = arith.constant 0 : index
    %c0_2 = arith.constant 0 : index
    %1 = vector.load %arg2[%c0_1, %c0_2] : memref<128x128xbf16, #tpu.memory_space<vmem>>, vector<128x128xbf16>
    %cst = arith.constant dense<0.000000e+00> : vector<16x128xf32>
    %2 = tpu.matmul %0, %1, %cst {dimension_numbers = #tpu.dot_dimension_numbers<[1], [0], [0], [1], [0, 0, 1, 1], [], []>} : vector<16x128xbf16>, vector<128x128xbf16>, vector<16x128xf32> -> vector<16x128xf32>
    %c0_3 = arith.constant 0 : index
    %c0_4 = arith.constant 0 : index
    %3 = vector.load %arg3[%c0_3, %c0_4] : memref<16x128xf32, #tpu.memory_space<vmem>>, vector<16x128xf32>
    tpu.vector_store %arg3[%c0_3, %c0_4], %2 {strides = array<i32>} : memref<16x128xf32, #tpu.memory_space<vmem>>, vector<16x128xf32>,
    return
  }
  func.func @transform_0(%arg0: i32) -> (i32, i32) {
    %c0_i32 = arith.constant 0 : i32
    %c0_i32_0 = arith.constant 0 : i32
    return %arg0, %c0_i32 : i32, i32
  }
  func.func @transform_1(%arg0: i32) -> (i32, i32) {
    %c0_i32 = arith.constant 0 : i32
    %c0_i32_0 = arith.constant 0 : i32
    %c0_i32_1 = arith.constant 0 : i32
    return %c0_i32, %c0_i32_0 : i32, i32
  }
  func.func @transform_2(%arg0: i32) -> (i32, i32) {
    %c0_i32 = arith.constant 0 : i32
    %c0_i32_0 = arith.constant 0 : i32
    return %arg0, %c0_i32 : i32, i32
  }
}

</mosaic_0001>

<llo_original>
// kernel: _spectral_conv1d_impl.1
$region0: #{_spectral_conv1d_impl.1}
  #allocation0 [shape = 'u32[]', space=smem, size = 0x4, offset = 0x4, fixed_abs, tag = 'smem constant byte address 0x4 - core index']
  #allocation1 [shape = 'u32[144,128]{1,0:T(1,128)}', space=vmem, size = 0x12000, scoped, tag = 'internal scratch']
  %s0 = inlined_call_operand.vmem [shape: bf16[16,128], index: 0, kind: input, shape index: {}]
  %s1 = inlined_call_operand.vmem [shape: bf16[128,128], index: 1, kind: input, shape index: {}]
  %s2 = inlined_call_operand.vmem [shape: f32[16,128], index: 2, kind: output, shape index: {}]
  %s3 = sld [smem:[#allocation0]]
  $region18: #{_spectral_conv1d_impl.1} parent=0
    _
  %s5 = ssub.s32 1, %s3
  %s6 = scalar_select 0, %s5, %s3
  // Predicated region
  $region2: #{_spectral_conv1d_impl.1} parent=0 // pred_check
    _
  $region3: #{_spectral_conv1d_impl.1} parent=0 // pred_check_branch
    %8 = sbr.rel (0) target = $region5
  $region4: #{_spectral_conv1d_impl.1} parent=0 // pred_region
    _
  $region5: #{_spectral_conv1d_impl.1} parent=0 // pred_fallthru
    _
  // Predicated region
  $region6: #{_spectral_conv1d_impl.1} parent=0 // pred_check
    _
  $region7: #{_spectral_conv1d_impl.1} parent=0 // pred_check_branch
    %10 = sbr.rel (0) target = $region9
  $region8: #{_spectral_conv1d_impl.1} parent=0 // pred_region
    _
  $region9: #{_spectral_conv1d_impl.1} parent=0 // pred_fallthru
    _
  %v12 = vld [vmem:[%s0] sm:$0xf]
  %v13 = vld [vmem:[%s0 + $0x4] sm:$0xf]
  %v14 = vld [vmem:[%s1] sm:$0xf]
  %v15 = vld [vmem:[%s1 + $0x4] sm:$0xf]
  %v16 = vld [vmem:[%s1 + $0x8] sm:$0xf]
  %v17 = vld [vmem:[%s1 + $0xc] sm:$0xf]
  %v18 = vld [vmem:[%s1 + $0x10] sm:$0xf]
  %v19 = vld [vmem:[%s1 + $0x14] sm:$0xf]
  %v20 = vld [vmem:[%s1 + $0x18] sm:$0xf]
  %v21 = vld [vmem:[%s1 + $0x1c] sm:$0xf]
  %v22 = vld [vmem:[%s1 + $0x20] sm:$0xf]
  %v23 = vld [vmem:[%s1 + $0x24] sm:$0xf]
  %v24 = vld [vmem:[%s1 + $0x28] sm:$0xf]
  %v25 = vld [vmem:[%s1 + $0x2c] sm:$0xf]
  %v26 = vld [vmem:[%s1 + $0x30] sm:$0xf]
  %v27 = vld [vmem:[%s1 + $0x34] sm:$0xf]
  %v28 = vld [vmem:[%s1 + $0x38] sm:$0xf]
  %v29 = vld [vmem:[%s1 + $0x3c] sm:$0xf]
  %v32 = vunpack.c.l.b16 %v12
  %v33 = vunpack.c.l.b16 %v13
  %v34 = vpack.c.b16 %v33, %v32
  %v52 = vunpack.c.l.b16 %v14
  %v53 = vunpack.c.l.b16 %v15
  %v54 = vunpack.c.l.b16 %v16
  %v55 = vunpack.c.l.b16 %v17
  %v56 = vunpack.c.l.b16 %v18
  %v57 = vunpack.c.l.b16 %v19
  %v58 = vunpack.c.l.b16 %v20
  %v59 = vunpack.c.l.b16 %v21
  %v60 = vunpack.c.l.b16 %v22
  %v61 = vunpack.c.l.b16 %v23
  %v62 = vunpack.c.l.b16 %v24
  %v63 = vunpack.c.l.b16 %v25
  %v64 = vunpack.c.l.b16 %v26
  %v65 = vunpack.c.l.b16 %v27
  %v66 = vunpack.c.l.b16 %v28
  %v67 = vunpack.c.l.b16 %v29
  %v68 = vpack.c.b16 %v53, %v52
  %v69 = vpack.c.b16 %v55, %v54
  %v70 = vpack.c.b16 %v57, %v56
  %v71 = vpack.c.b16 %v59, %v58
  %v72 = vpack.c.b16 %v61, %v60
  %v73 = vpack.c.b16 %v63, %v62
  %v74 = vpack.c.b16 %v65, %v64
  %v75 = vpack.c.b16 %v67, %v66
  %84 = vmatprep.subr.bf16.mxu0 0
  %85 = vmatpush1.bf16.msra.mxu0 %v68
  %86 = vmatprep.subr.bf16.mxu0 0
  %87 = vmatpush1.bf16.msra.mxu0 %v69
  %88 = vmatprep.subr.bf16.mxu0 0
  %89 = vmatpush1.bf16.msra.mxu0 %v70
  %90 = vmatprep.subr.bf16.mxu0 0
  %91 = vmatpush1.bf16.msra.mxu0 %v71
  %92 = vmatprep.subr.bf16.mxu0 0
  %93 = vmatpush1.bf16.msra.mxu0 %v72
  %94 = vmatprep.subr.bf16.mxu0 0
  %95 = vmatpush1.bf16.msra.mxu0 %v73
  %96 = vmatprep.subr.bf16.mxu0 0
  %97 = vmatpush1.bf16.msra.mxu0 %v74
  %98 = vmatprep.subr.bf16.mxu0 0
  %99 = vmatpush1.bf16.msra.mxu0 %v75
  %100 = vmatprep.subr.bf16.mxu0 0
  %101 = vmatpush1.bf16.msra.mxu0 0
  %102 = vmatprep.subr.bf16.mxu0 0
  %103 = vmatpush1.bf16.msra.mxu0 0
  %104 = vmatprep.subr.bf16.mxu0 0
  %105 = vmatpush1.bf16.msra.mxu0 0
  %106 = vmatprep.subr.bf16.mxu0 0
  %107 = vmatpush1.bf16.msra.mxu0 0
  %108 = vmatprep.subr.bf16.mxu0 0
  %109 = vmatpush1.bf16.msra.mxu0 0
  %110 = vmatprep.subr.bf16.mxu0 0
  %111 = vmatpush1.bf16.msra.mxu0 0
  %112 = vmatprep.subr.bf16.mxu0 0
  %113 = vmatpush1.bf16.msra.mxu0 0
  %114 = vmatprep.subr.bf16.mxu0 0
  %115 = vmatpush1.bf16.msra.mxu0 0
  %116 = vmatprep.mubr.bf16.mxu0 0
  %117 = vmatmul.mubr.bf16.gmra.mrb[0].mxu0 %v34
  %v118 = vpop.f32.mrb[0].mxu0
  %v119 = vadd.f32 0.0, %v118
  %v120 = vpop.f32.mrb[0].mxu0
  %v121 = vpop.f32.mrb[0].mxu0
  %v122 = vadd.f32 0.0, %v121
  %v123 = vpop.f32.mrb[0].mxu0
  %124 = vdwg.mxu0
  %125 = vst [vmem:[%s2] sm:$0xff] %v119
  %126 = vst [vmem:[%s2 + $0x8] sm:$0xff] %v122
  // Predicated region
  $region10: #{_spectral_conv1d_impl.1} parent=0 // pred_check
    _
  $region11: #{_spectral_conv1d_impl.1} parent=0 // pred_check_branch
    %128 = sbr.rel (0) target = $region13
  $region12: #{_spectral_conv1d_impl.1} parent=0 // pred_region
    _
  $region13: #{_spectral_conv1d_impl.1} parent=0 // pred_fallthru
    _
  // Predicated region
  $region14: #{_spectral_conv1d_impl.1} parent=0 // pred_check
    _
  $region15: #{_spectral_conv1d_impl.1} parent=0 // pred_check_branch
    %130 = sbr.rel (0) target = $region17
  $region16: #{_spectral_conv1d_impl.1} parent=0 // pred_region
    _
  $region17: #{_spectral_conv1d_impl.1} parent=0 // pred_fallthru
    _

</llo_original>
